<compile_context>
chip_gen: v6e
topology: v6e:2x2x1
jax: 0.10.0
libtpu: 0.0.40
codegen_flags: <defaults>
</compile_context>

<pallas_src>
import jax
import jax.numpy as jnp
from jax import lax
from jax.experimental import pallas as pl
from jax.experimental.pallas import tpu as pltpu

V_TH = 1.0      # IF-neuron firing threshold (single step, membrane potential starts at 0)
BN_EPS = 1e-5


def _banded_weights(w_oihw, W):
    """Fold the kw tap (including the W-axis zero halo) and the Ci->Co contraction of a
    3x3 / pad-1 conv into per-kh banded matrices acting on the UNPADDED lane-folded rows:

        B[kh, wi*Ci + ci, wo*Co + co] = w[co, ci, kh, wi - wo + 1]   (0 if wi-wo+1 not in {0,1,2})

    so that for lane-folded activations  A[r, wi*Ci + ci] = x[r, wi, ci]:

        conv_out[r, wo*Co + co] = sum_kh ( A[r - 1 + kh, :] @ B[kh] )[wo*Co + co]

    Out-of-range kw taps simply have no row, which is exactly zero padding along W.
    """
    Co, Ci, KH, KW = w_oihw.shape
    w_k = jnp.transpose(w_oihw, (2, 3, 1, 0)).astype(jnp.float32)        # (KH, KW, Ci, Co)
    # shift[kw, wi, wo] = 1  iff  wi == wo + kw - 1   (wi restricted to [0, W) -> W halo)
    shift = (jnp.arange(W)[None, :, None] ==
             (jnp.arange(W)[None, None, :] + jnp.arange(KW)[:, None, None] - 1)
             ).astype(jnp.float32)                                        # (KW, W, W)
    B = jnp.einsum('xiw,kxco->kicwo', shift, w_k)                         # (KH, W, Ci, W, Co)
    return B.reshape(KH, W * Ci, W * Co).astype(jnp.bfloat16)


def _pick_batch_block(N, Hp, target_rows=512):
    """Largest NB dividing N whose (NB*Hp)-row block satisfies the sublane constraint
    (multiple of 8, or the whole array) while staying under ~target_rows."""
    valid = [nb for nb in range(1, N + 1)
             if N % nb == 0 and (nb == N or (nb * Hp) % 8 == 0)]
    under = [nb for nb in valid if nb * Hp <= target_rows]
    return max(under) if under else min(valid)


def _make_block_kernel(cnf, Hp, Mb):
    """Fused conv1+BN1+spike -> conv2+BN2+spike -> SEW merge, NB padded images per step."""

    def _shift_down(a):   # out[r] = a[r-1], out[0] = 0   (sublane-only data movement)
        return jnp.concatenate([jnp.zeros_like(a[:1]), a[:-1]], axis=0)

    def _shift_up(a):     # out[r] = a[r+1], out[-1] = 0
        return jnp.concatenate([a[1:], jnp.zeros_like(a[:1])], axis=0)

    def kernel(x_ref, w1_ref, w2_ref, bn_ref, o_ref):
        x_f32 = x_ref[...]                                  # (Mb, W*Cin) f32, H-padded rows stacked
        x_bf = x_f32.astype(jnp.bfloat16)                   # single hoisted cast for the MXU
        bn = bn_ref[...]                                    # (4, W*planes) f32

        # Rows with r % Hp in {0, Hp-1} are per-image H-halo rows (zero in x, garbage in acc).
        rr = lax.broadcasted_iota(jnp.int32, (Mb, 1), 0) % Hp
        interior = jnp.logical_and(rr != 0, rr != Hp - 1)

        # ---- conv1: three banded bf16 MXU matmuls; the kh tap is a sublane shift of the
        #      f32 partial product (row r of the output reads input rows r-1, r, r+1) ----
        p0 = jnp.dot(x_bf, w1_ref[0], preferred_element_type=jnp.float32)
        p1 = jnp.dot(x_bf, w1_ref[1], preferred_element_type=jnp.float32)
        p2 = jnp.dot(x_bf, w1_ref[2], preferred_element_type=jnp.float32)
        acc1 = _shift_down(p0) + p1 + _shift_up(p2)
        y1 = acc1 * bn[0:1, :] + bn[1:2, :]                 # eval-mode BN (folded scale/bias)
        # IF spike: exactly 0/1, emitted directly in bf16; halo rows forced to 0 so the
        # stacked spike map is already H-padded for conv2 (no re-pad / concatenate needed).
        s1 = jnp.logical_and(y1 >= V_TH, interior).astype(jnp.bfloat16)

        # ---- conv2 + BN2 + IF spike ----
        q0 = jnp.dot(s1, w2_ref[0], preferred_element_type=jnp.float32)
        q1 = jnp.dot(s1, w2_ref[1], preferred_element_type=jnp.float32)
        q2 = jnp.dot(s1, w2_ref[2], preferred_element_type=jnp.float32)
        acc2 = _shift_down(q0) + q1 + _shift_up(q2)
        y2 = acc2 * bn[2:3, :] + bn[3:4, :]
        s2 = (y2 >= V_TH).astype(jnp.float32)

        # ---- SEW merge with the identity (= x itself, same stacked layout; halo rows
        #      carry garbage and are sliced away by the host) ----
        if cnf == 'ADD':
            out = x_f32 + s2
        elif cnf == 'AND':
            out = x_f32 * s2
        elif cnf == 'IAND':
            out = x_f32 * (1.0 - s2)
        else:
            raise NotImplementedError(cnf)
        o_ref[...] = out

    return kernel


def basic_block_forward(x_nchw, params, cnf='ADD'):
    """SEW BasicBlock forward (stride=1, downsample=None, so identity = x)."""
    # TODO(synk): spiking_neuron is modeled as a single-step IF neuron
    #   (spike = Heaviside(membrane - 1.0), membrane starts at 0 => spike = (x >= 1)),
    #   no state across time steps; BatchNorm is eval-mode with folded stats.
    # TODO(synk): stride>1 / downsample branch not implemented (with downsample=None the
    #   PyTorch module itself requires stride=1 and inplanes==planes for the SEW merge).
    if params['stride'] != 1:
        raise NotImplementedError('stride>1 requires the downsample branch')

    N, C, H, W = x_nchw.shape
    planes = params['conv1_w'].shape[0]
    if planes != C:
        raise NotImplementedError('inplanes != planes requires the downsample branch')

    Hp = H + 2                  # per-image row count incl. the 1-px H halo
    K1 = W * C                  # lane width of the folded input
    WoP = W * planes            # lane width of the folded outputs

    # NCHW -> NHWC, pad ONLY the H halo (the W halo lives in the banded weights),
    # fold (W, C) into the lane axis and stack the padded images along the sublane axis.
    x = jnp.transpose(x_nchw, (0, 2, 3, 1)).astype(jnp.float32)     # (N, H, W, C)
    xp = jnp.pad(x, ((0, 0), (1, 1), (0, 0), (0, 0)))               # (N, Hp, W, C)
    x2d = xp.reshape(N * Hp, K1)                                    # stacked, lane-folded

    w1b = _banded_weights(params['conv1_w'], W)                     # (3, W*C,      W*planes)
    w2b = _banded_weights(params['conv2_w'], W)                     # (3, W*planes, W*planes)
    bn = jnp.stack([jnp.tile(params['bn1_scale'], W),
                    jnp.tile(params['bn1_bias'], W),
                    jnp.tile(params['bn2_scale'], W),
                    jnp.tile(params['bn2_bias'], W)]).astype(jnp.float32)   # (4, W*planes)

    NB = _pick_batch_block(N, Hp)                                   # images per grid step
    Mb = NB * Hp                                                    # matmul M per step
    grid = (N // NB,)

    flops = 2 * 3 * (N * Hp) * (K1 * WoP + WoP * WoP)
    bytes_accessed = (x2d.size + N * Hp * WoP + bn.size) * 4 + (w1b.size + w2b.size) * 2

    out2d = pl.pallas_call(
        _make_block_kernel(cnf, Hp, Mb),
        out_shape=jax.ShapeDtypeStruct((N * Hp, WoP), jnp.float32),
        grid=grid,
        in_specs=[
            pl.BlockSpec((Mb, K1), lambda n: (n, 0)),           # NB stacked padded images
            pl.BlockSpec((3, K1, WoP), lambda n: (0, 0, 0)),    # conv1 banded weights (resident)
            pl.BlockSpec((3, WoP, WoP), lambda n: (0, 0, 0)),   # conv2 banded weights (resident)
            pl.BlockSpec((4, WoP), lambda n: (0, 0)),           # folded BN scale/bias rows
        ],
        out_specs=pl.BlockSpec((Mb, WoP), lambda n: (n, 0)),
        compiler_params=pltpu.CompilerParams(
            dimension_semantics=("parallel",),
            vmem_limit_bytes=32 * 1024 * 1024),
        cost_estimate=pl.CostEstimate(flops=flops, transcendentals=0,
                                      bytes_accessed=bytes_accessed),
    )(x2d, w1b, w2b, bn)

    # Drop the per-image H-halo rows, un-fold lanes, NHWC -> NCHW (cheap XLA reshapes).
    out = out2d.reshape(N, Hp, W, planes)[:, 1:1 + H]
    return jnp.transpose(out, (0, 3, 1, 2))


def init_params(key, inplanes, planes, stride=1):
    ks = jax.random.split(key, 10)

    def bn_fold(kg, kb, km, kv, c):
        gamma = 1.0 + 0.1 * jax.random.normal(kg, (c,), jnp.float32)
        beta = 0.1 * jax.random.normal(kb, (c,), jnp.float32)
        running_mean = 0.1 * jax.random.normal(km, (c,), jnp.float32)
        running_var = jax.random.uniform(kv, (c,), jnp.float32, 0.5, 1.5)
        s = gamma / jnp.sqrt(running_var + BN_EPS)
        b = beta - running_mean * s
        return s, b

    w1 = 0.3 * jax.random.normal(ks[0], (planes, inplanes, 3, 3), jnp.float32)
    w2 = 0.3 * jax.random.normal(ks[1], (planes, planes, 3, 3), jnp.float32)
    bn1_scale, bn1_bias = bn_fold(ks[2], ks[3], ks[4], ks[5], planes)
    bn2_scale, bn2_bias = bn_fold(ks[6], ks[7], ks[8], ks[9], planes)
    return dict(conv1_w=w1, conv2_w=w2,
                bn1_scale=bn1_scale, bn1_bias=bn1_bias,
                bn2_scale=bn2_scale, bn2_bias=bn2_bias,
                stride=stride)


def _ref_forward(x_nchw, params, cnf):
    """Pure-JAX reference (lax conv). Conv operands are bf16-rounded to mirror the
    kernel's bf16 MXU matmuls; BN/identity/merge stay in f32."""
    x = jnp.transpose(x_nchw, (0, 2, 3, 1)).astype(jnp.float32)

    def conv(a, w):
        a_b = a.astype(jnp.bfloat16).astype(jnp.float32)
        w_hwio = jnp.transpose(w, (2, 3, 1, 0)).astype(jnp.bfloat16).astype(jnp.float32)
        return lax.conv_general_dilated(a_b, w_hwio, (1, 1), ((1, 1), (1, 1)),
                                        dimension_numbers=('NHWC', 'HWIO', 'NHWC'),
                                        precision=lax.Precision.HIGHEST)

    def bn_spike(y, s, b):
        return (y * s + b >= V_TH).astype(jnp.float32)

    s1 = bn_spike(conv(x, params['conv1_w']), params['bn1_scale'], params['bn1_bias'])
    s2 = bn_spike(conv(s1, params['conv2_w']), params['bn2_scale'], params['bn2_bias'])
    if cnf == 'ADD':
        out = x + s2
    elif cnf == 'AND':
        out = x * s2
    elif cnf == 'IAND':
        out = x * (1.0 - s2)
    else:
        raise NotImplementedError(cnf)
    return jnp.transpose(out, (0, 3, 1, 2))


if __name__ == "__main__":
    key = jax.random.PRNGKey(0)
    kx, kp = jax.random.split(key)
    # inplanes = planes = 4, stride = 1, downsample = None, cnf = 'ADD'
    N, C, H, W = 2, 4, 16, 16
    x = jax.random.normal(kx, (N, C, H, W), jnp.float32)
    params = init_params(kp, C, C, stride=1)

    fwd = jax.jit(lambda v: basic_block_forward(v, params, cnf='ADD'))
    out = jax.block_until_ready(fwd(x))
    assert out.shape == (N, C, H, W) and out.dtype == jnp.float32
    assert bool(jnp.all(jnp.isfinite(out)))

    # Validate against the pure-JAX reference. Spikes are Heaviside outputs, so allow
    # an (extremely rare) threshold-boundary flip while requiring the continuous part
    # to match tightly.
    ref = jax.block_until_ready(_ref_forward(x, params, 'ADD'))
    diff = jnp.abs(out - ref)
    flip_frac = float(jnp.mean(diff > 1e-2))
    cont_err = float(jnp.max(jnp.where(diff > 1e-2, 0.0, diff)))
    assert flip_frac <= 0.005, f"too many spike mismatches: {flip_frac}"
    assert cont_err <= 1e-3, f"continuous mismatch: {cont_err}"

    print("KERNEL_OK")
</pallas_src>

<mosaic_0001>
module attributes {stable_mosaic.version = 11 : i64} {
  func.func @kernel(%arg0: i32, %arg1: memref<36x64xf32, #tpu.memory_space<vmem>>, %arg2: memref<3x64x64xbf16, #tpu.memory_space<vmem>>, %arg3: memref<3x64x64xbf16, #tpu.memory_space<vmem>>, %arg4: memref<4x64xf32, #tpu.memory_space<vmem>>, %arg5: memref<36x64xf32, #tpu.memory_space<vmem>>) attributes {dimension_semantics = [#tpu.dimension_semantics<parallel>], iteration_bounds = array<i64: 1>, scalar_prefetch = 0 : i64, scratch_operands = 0 : i64, tpu.core_type = #tpu.core_type<tc>, window_params = [{transform_indices = @transform_0, window_bounds = array<i64: 36, 64>}, {pipeline_mode = #tpu.pipeline_mode<synchronous>, transform_indices = @transform_1, window_bounds = array<i64: 3, 64, 64>}, {pipeline_mode = #tpu.pipeline_mode<synchronous>, transform_indices = @transform_2, window_bounds = array<i64: 3, 64, 64>}, {pipeline_mode = #tpu.pipeline_mode<synchronous>, transform_indices = @transform_3, window_bounds = array<i64: 4, 64>}, {transform_indices = @transform_4, window_bounds = array<i64: 36, 64>}]} {
    %c0 = arith.constant 0 : index
    %c0_0 = arith.constant 0 : index
    %0 = vector.load %arg1[%c0, %c0_0] : memref<36x64xf32, #tpu.memory_space<vmem>>, vector<36x64xf32>
    %1 = arith.truncf %0 : vector<36x64xf32> to vector<36x64xbf16>
    %c0_1 = arith.constant 0 : index
    %c0_2 = arith.constant 0 : index
    %2 = vector.load %arg4[%c0_1, %c0_2] : memref<4x64xf32, #tpu.memory_space<vmem>>, vector<4x64xf32>
    %3 = tpu.iota {dimensions = array<i32: 0>} : vector<36x1xi32>
    %c18_i32 = arith.constant 18 : i32
    %c0_i32 = arith.constant 0 : i32
    %4 = arith.cmpi eq, %c18_i32, %c0_i32 : i32
    %c1_i32 = arith.constant 1 : i32
    %5 = arith.select %4, %c1_i32, %c18_i32 : i32
    %6 = vector.broadcast %5 : i32 to vector<36x1xi32>
    %7 = arith.remsi %3, %6 : vector<36x1xi32>
    %c0_i32_3 = arith.constant 0 : i32
    %8 = vector.broadcast %c0_i32_3 : i32 to vector<36x1xi32>
    %9 = arith.cmpi ne, %7, %8 : vector<36x1xi32>
    %c0_i32_4 = arith.constant 0 : i32
    %10 = vector.broadcast %c0_i32_4 : i32 to vector<36x1xi32>
    %11 = arith.cmpi slt, %7, %10 : vector<36x1xi32>
    %c0_i32_5 = arith.constant 0 : i32
    %12 = arith.cmpi slt, %5, %c0_i32_5 : i32
    %13 = vector.broadcast %12 : i1 to vector<36x1xi1>
    %14 = vector.broadcast %13 : vector<36x1xi1> to vector<36x1xi1>
    %15 = arith.xori %11, %14 : vector<36x1xi1>
    %16 = arith.andi %15, %9 : vector<36x1xi1>
    %17 = vector.broadcast %5 : i32 to vector<36x1xi32>
    %18 = arith.addi %7, %17 : vector<36x1xi32>
    %19 = arith.select %16, %18, %7 : vector<36x1xi1>, vector<36x1xi32>
    %c0_i32_6 = arith.constant 0 : i32
    %20 = vector.broadcast %c0_i32_6 : i32 to vector<36x1xi32>
    %21 = arith.cmpi ne, %19, %20 : vector<36x1xi32>
    %c17_i32 = arith.constant 17 : i32
    %22 = vector.broadcast %c17_i32 : i32 to vector<36x1xi32>
    %23 = arith.cmpi ne, %19, %22 : vector<36x1xi32>
    %24 = arith.andi %21, %23 : vector<36x1xi1>
    %c0_7 = arith.constant 0 : index
    %c0_8 = arith.constant 0 : index
    %c0_9 = arith.constant 0 : index
    %25 = vector.load %arg2[%c0_7, %c0_8, %c0_9] : memref<3x64x64xbf16, #tpu.memory_space<vmem>>, vector<1x64x64xbf16>
    %26 = vector.shape_cast %25 : vector<1x64x64xbf16> to vector<64x64xbf16>
    %cst = arith.constant dense<0.000000e+00> : vector<36x64xf32>
    %27 = tpu.matmul %1, %26, %cst {dimension_numbers = #tpu.dot_dimension_numbers<[1], [0], [0], [1], [0, 0, 1, 1], [], []>} : vector<36x64xbf16>, vector<64x64xbf16>, vector<36x64xf32> -> vector<36x64xf32>
    %c1 = arith.constant 1 : index
    %c0_10 = arith.constant 0 : index
    %c0_11 = arith.constant 0 : index
    %28 = vector.load %arg2[%c1, %c0_10, %c0_11] : memref<3x64x64xbf16, #tpu.memory_space<vmem>>, vector<1x64x64xbf16>
    %29 = vector.shape_cast %28 : vector<1x64x64xbf16> to vector<64x64xbf16>
    %cst_12 = arith.constant dense<0.000000e+00> : vector<36x64xf32>
    %30 = tpu.matmul %1, %29, %cst_12 {dimension_numbers = #tpu.dot_dimension_numbers<[1], [0], [0], [1], [0, 0, 1, 1], [], []>} : vector<36x64xbf16>, vector<64x64xbf16>, vector<36x64xf32> -> vector<36x64xf32>
    %c2 = arith.constant 2 : index
    %c0_13 = arith.constant 0 : index
    %c0_14 = arith.constant 0 : index
    %31 = vector.load %arg2[%c2, %c0_13, %c0_14] : memref<3x64x64xbf16, #tpu.memory_space<vmem>>, vector<1x64x64xbf16>
    %32 = vector.shape_cast %31 : vector<1x64x64xbf16> to vector<64x64xbf16>
    %cst_15 = arith.constant dense<0.000000e+00> : vector<36x64xf32>
    %33 = tpu.matmul %1, %32, %cst_15 {dimension_numbers = #tpu.dot_dimension_numbers<[1], [0], [0], [1], [0, 0, 1, 1], [], []>} : vector<36x64xbf16>, vector<64x64xbf16>, vector<36x64xf32> -> vector<36x64xf32>
    %cst_16 = arith.constant 0.000000e+00 : f32
    %34 = vector.broadcast %cst_16 : f32 to vector<1x64xf32>
    %35 = vector.extract_strided_slice %27 {offsets = [0, 0], sizes = [35, 64], strides = [1, 1]} : vector<36x64xf32> to vector<35x64xf32>
    %36 = tpu.concatenate %34, %35 in 0 : vector<1x64xf32>, vector<35x64xf32> -> vector<36x64xf32>
    %37 = arith.addf %36, %30 : vector<36x64xf32>
    %38 = vector.extract_strided_slice %33 {offsets = [1, 0], sizes = [35, 64], strides = [1, 1]} : vector<36x64xf32> to vector<35x64xf32>
    %cst_17 = arith.constant 0.000000e+00 : f32
    %39 = vector.broadcast %cst_17 : f32 to vector<1x64xf32>
    %40 = tpu.concatenate %38, %39 in 0 : vector<35x64xf32>, vector<1x64xf32> -> vector<36x64xf32>
    %41 = arith.addf %37, %40 : vector<36x64xf32>
    %42 = vector.extract_strided_slice %2 {offsets = [0, 0], sizes = [1, 64], strides = [1, 1]} : vector<4x64xf32> to vector<1x64xf32>
    %43 = vector.broadcast %42 : vector<1x64xf32> to vector<36x64xf32>
    %44 = arith.mulf %41, %43 : vector<36x64xf32>
    %45 = vector.extract_strided_slice %2 {offsets = [1, 0], sizes = [1, 64], strides = [1, 1]} : vector<4x64xf32> to vector<1x64xf32>
    %46 = vector.broadcast %45 : vector<1x64xf32> to vector<36x64xf32>
    %47 = arith.addf %44, %46 : vector<36x64xf32>
    %cst_18 = arith.constant 1.000000e+00 : f32
    %48 = vector.broadcast %cst_18 : f32 to vector<36x64xf32>
    %49 = arith.cmpf oge, %47, %48 : vector<36x64xf32>
    %50 = vector.broadcast %24 : vector<36x1xi1> to vector<36x64xi1>
    %51 = arith.andi %49, %50 : vector<36x64xi1>
    %52 = arith.extui %51 : vector<36x64xi1> to vector<36x64xi32>
    %53 = arith.sitofp %52 : vector<36x64xi32> to vector<36x64xf32>
    %54 = arith.truncf %53 : vector<36x64xf32> to vector<36x64xbf16>
    %c0_19 = arith.constant 0 : index
    %c0_20 = arith.constant 0 : index
    %c0_21 = arith.constant 0 : index
    %55 = vector.load %arg3[%c0_19, %c0_20, %c0_21] : memref<3x64x64xbf16, #tpu.memory_space<vmem>>, vector<1x64x64xbf16>
    %56 = vector.shape_cast %55 : vector<1x64x64xbf16> to vector<64x64xbf16>
    %cst_22 = arith.constant dense<0.000000e+00> : vector<36x64xf32>
    %57 = tpu.matmul %54, %56, %cst_22 {dimension_numbers = #tpu.dot_dimension_numbers<[1], [0], [0], [1], [0, 0, 1, 1], [], []>} : vector<36x64xbf16>, vector<64x64xbf16>, vector<36x64xf32> -> vector<36x64xf32>
    %c1_23 = arith.constant 1 : index
    %c0_24 = arith.constant 0 : index
    %c0_25 = arith.constant 0 : index
    %58 = vector.load %arg3[%c1_23, %c0_24, %c0_25] : memref<3x64x64xbf16, #tpu.memory_space<vmem>>, vector<1x64x64xbf16>
    %59 = vector.shape_cast %58 : vector<1x64x64xbf16> to vector<64x64xbf16>
    %cst_26 = arith.constant dense<0.000000e+00> : vector<36x64xf32>
    %60 = tpu.matmul %54, %59, %cst_26 {dimension_numbers = #tpu.dot_dimension_numbers<[1], [0], [0], [1], [0, 0, 1, 1], [], []>} : vector<36x64xbf16>, vector<64x64xbf16>, vector<36x64xf32> -> vector<36x64xf32>
    %c2_27 = arith.constant 2 : index
    %c0_28 = arith.constant 0 : index
    %c0_29 = arith.constant 0 : index
    %61 = vector.load %arg3[%c2_27, %c0_28, %c0_29] : memref<3x64x64xbf16, #tpu.memory_space<vmem>>, vector<1x64x64xbf16>
    %62 = vector.shape_cast %61 : vector<1x64x64xbf16> to vector<64x64xbf16>
    %cst_30 = arith.constant dense<0.000000e+00> : vector<36x64xf32>
    %63 = tpu.matmul %54, %62, %cst_30 {dimension_numbers = #tpu.dot_dimension_numbers<[1], [0], [0], [1], [0, 0, 1, 1], [], []>} : vector<36x64xbf16>, vector<64x64xbf16>, vector<36x64xf32> -> vector<36x64xf32>
    %cst_31 = arith.constant 0.000000e+00 : f32
    %64 = vector.broadcast %cst_31 : f32 to vector<1x64xf32>
    %65 = vector.extract_strided_slice %57 {offsets = [0, 0], sizes = [35, 64], strides = [1, 1]} : vector<36x64xf32> to vector<35x64xf32>
    %66 = tpu.concatenate %64, %65 in 0 : vector<1x64xf32>, vector<35x64xf32> -> vector<36x64xf32>
    %67 = arith.addf %66, %60 : vector<36x64xf32>
    %68 = vector.extract_strided_slice %63 {offsets = [1, 0], sizes = [35, 64], strides = [1, 1]} : vector<36x64xf32> to vector<35x64xf32>
    %cst_32 = arith.constant 0.000000e+00 : f32
    %69 = vector.broadcast %cst_32 : f32 to vector<1x64xf32>
    %70 = tpu.concatenate %68, %69 in 0 : vector<35x64xf32>, vector<1x64xf32> -> vector<36x64xf32>
    %71 = arith.addf %67, %70 : vector<36x64xf32>
    %72 = vector.extract_strided_slice %2 {offsets = [2, 0], sizes = [1, 64], strides = [1, 1]} : vector<4x64xf32> to vector<1x64xf32>
    %73 = vector.broadcast %72 : vector<1x64xf32> to vector<36x64xf32>
    %74 = arith.mulf %71, %73 : vector<36x64xf32>
    %75 = vector.extract_strided_slice %2 {offsets = [3, 0], sizes = [1, 64], strides = [1, 1]} : vector<4x64xf32> to vector<1x64xf32>
    %76 = vector.broadcast %75 : vector<1x64xf32> to vector<36x64xf32>
    %77 = arith.addf %74, %76 : vector<36x64xf32>
    %cst_33 = arith.constant 1.000000e+00 : f32
    %78 = vector.broadcast %cst_33 : f32 to vector<36x64xf32>
    %79 = arith.cmpf oge, %77, %78 : vector<36x64xf32>
    %80 = arith.extui %79 : vector<36x64xi1> to vector<36x64xi32>
    %81 = arith.sitofp %80 : vector<36x64xi32> to vector<36x64xf32>
    %82 = arith.addf %0, %81 : vector<36x64xf32>
    %c0_34 = arith.constant 0 : index
    %c0_35 = arith.constant 0 : index
    %83 = vector.load %arg5[%c0_34, %c0_35] : memref<36x64xf32, #tpu.memory_space<vmem>>, vector<36x64xf32>
    tpu.vector_store %arg5[%c0_34, %c0_35], %82 {strides = array<i32>} : memref<36x64xf32, #tpu.memory_space<vmem>>, vector<36x64xf32>,
    return
  }
  func.func @transform_0(%arg0: i32) -> (i32, i32) {
    %c0_i32 = arith.constant 0 : i32
    %c0_i32_0 = arith.constant 0 : i32
    return %arg0, %c0_i32 : i32, i32
  }
  func.func @transform_1(%arg0: i32) -> (i32, i32, i32) {
    %c0_i32 = arith.constant 0 : i32
    %c0_i32_0 = arith.constant 0 : i32
    %c0_i32_1 = arith.constant 0 : i32
    %c0_i32_2 = arith.constant 0 : i32
    return %c0_i32, %c0_i32_0, %c0_i32_1 : i32, i32, i32
  }
  func.func @transform_2(%arg0: i32) -> (i32, i32, i32) {
    %c0_i32 = arith.constant 0 : i32
    %c0_i32_0 = arith.constant 0 : i32
    %c0_i32_1 = arith.constant 0 : i32
    %c0_i32_2 = arith.constant 0 : i32
    return %c0_i32, %c0_i32_0, %c0_i32_1 : i32, i32, i32
  }
  func.func @transform_3(%arg0: i32) -> (i32, i32) {
    %c0_i32 = arith.constant 0 : i32
    %c0_i32_0 = arith.constant 0 : i32
    %c0_i32_1 = arith.constant 0 : i32
    return %c0_i32, %c0_i32_0 : i32, i32
  }
  func.func @transform_4(%arg0: i32) -> (i32, i32) {
    %c0_i32 = arith.constant 0 : i32
    %c0_i32_0 = arith.constant 0 : i32
    return %arg0, %c0_i32 : i32, i32
  }
}

</mosaic_0001>

<llo_original>
// kernel: tile.18
$region0: #{tile.18}
  #allocation0 [shape = 's32[1]{0}', space=sflag, size = 0x4, scoped, tag = 'scoped memory for tile.18']
  %s0 = inlined_call_operand.vmem [shape: f32[4], index: 0, kind: input, shape index: {}]
  %s1 = inlined_call_operand.vmem [shape: f32[16,4], index: 1, kind: output, shape index: {}]
  // Predicated region
  $region2: #{tile.18} parent=0 // pred_check
    _
  $region3: #{tile.18} parent=0 // pred_check_branch
    %3 = sbr.rel (0) target = $region5
  $region4: #{tile.18} parent=0 // pred_region
    _
  $region5: #{tile.18} parent=0 // pred_fallthru
    _
  %v4 = vld [vmem:[%s0] ss:$0 sm:$0xff]
  %5 = vst [vmem:[%s1] sm:$0xff] %v4
  %s6 = scalar_lea.vmem %s1, 8
  %7 = vst [vmem:[%s6] sm:$0xff] %v4

// kernel: tile.28
$region0: #{tile.28}
  %s0 = inlined_call_operand.vmem [shape: f32[16,4], index: 0, kind: input, shape index: {}]
  %s1 = inlined_call_operand.vmem [shape: f32[1,64], index: 1, kind: output, shape index: {}]
  $region1: #{tile.28} parent=0
    #allocation0 [shape = 'u8[4096]{0}', space=vmem, size = 0x1000, scoped, tag = 'scoped mem for output reshape']
    %v2 = vld [vmem:[%s0] sm:$0x1]
    %vm3 = vcmask 31744
    %4 = vst.msk [vmem:[#allocation0] sm:$0x1] %vm3, %v2
    %s5 = scalar_lea.vmem %s0, 15
    %v6 = vld [vmem:[%s5] sm:$0x1]
    %7 = vrot.lane.b32.xlu0 %v6, 60
    %v8 = vpop.permute.xlu0 %7
    %vm9 = vcmask 523744
    %10 = vst.msk [vmem:[#allocation0] sm:$0x1] %vm9, %v8
    %s11 = scalar_lea.vmem %s0, 14
    %v12 = vld [vmem:[%s11] sm:$0x1]
    %13 = vrot.lane.b32.xlu0 %v12, 56
    %v14 = vpop.permute.xlu0 %13
    %vm15 = vcmask 490944
    %16 = vst.msk [vmem:[#allocation0] sm:$0x1] %vm15, %v14
    %s17 = scalar_lea.vmem %s0, 13
    %v18 = vld [vmem:[%s17] sm:$0x1]
    %19 = vrot.lane.b32.xlu0 %v18, 52
    %v20 = vpop.permute.xlu0 %19
    %vm21 = vcmask 458144
    %22 = vst.msk [vmem:[#allocation0] sm:$0x1] %vm21, %v20
    %s23 = scalar_lea.vmem %s0, 12
    %v24 = vld [vmem:[%s23] sm:$0x1]
    %25 = vrot.lane.b32.xlu0 %v24, 48
    %v26 = vpop.permute.xlu0 %25
    %vm27 = vcmask 425344
    %28 = vst.msk [vmem:[#allocation0] sm:$0x1] %vm27, %v26
    %s29 = scalar_lea.vmem %s0, 11
    %v30 = vld [vmem:[%s29] sm:$0x1]
    %31 = vrot.lane.b32.xlu0 %v30, 44
    %v32 = vpop.permute.xlu0 %31
    %vm33 = vcmask 392544
    %34 = vst.msk [vmem:[#allocation0] sm:$0x1] %vm33, %v32
    %s35 = scalar_lea.vmem %s0, 10
    %v36 = vld [vmem:[%s35] sm:$0x1]
    %37 = vrot.lane.b32.xlu0 %v36, 40
    %v38 = vpop.permute.xlu0 %37
    %vm39 = vcmask 359744
    %40 = vst.msk [vmem:[#allocation0] sm:$0x1] %vm39, %v38
    %s41 = scalar_lea.vmem %s0, 9
    %v42 = vld [vmem:[%s41] sm:$0x1]
    %43 = vrot.lane.b32.xlu0 %v42, 36
    %v44 = vpop.permute.xlu0 %43
    %vm45 = vcmask 326944
    %46 = vst.msk [vmem:[#allocation0] sm:$0x1] %vm45, %v44
    %s47 = scalar_lea.vmem %s0, 8
    %v48 = vld [vmem:[%s47] sm:$0x1]
    %49 = vrot.lane.b32.xlu0 %v48, 32
    %v50 = vpop.permute.xlu0 %49
    %vm51 = vcmask 294144
    %52 = vst.msk [vmem:[#allocation0] sm:$0x1] %vm51, %v50
    %s53 = scalar_lea.vmem %s0, 7
    %v54 = vld [vmem:[%s53] sm:$0x1]
    %55 = vrot.lane.b32.xlu0 %v54, 28
    %v56 = vpop.permute.xlu0 %55
    %vm57 = vcmask 261344
    %58 = vst.msk [vmem:[#allocation0] sm:$0x1] %vm57, %v56
    %s59 = scalar_lea.vmem %s0, 6
    %v60 = vld [vmem:[%s59] sm:$0x1]
    %61 = vrot.lane.b32.xlu0 %v60, 24
    %v62 = vpop.permute.xlu0 %61
    %vm63 = vcmask 228544
    %64 = vst.msk [vmem:[#allocation0] sm:$0x1] %vm63, %v62
    %s65 = scalar_lea.vmem %s0, 5
    %v66 = vld [vmem:[%s65] sm:$0x1]
    %67 = vrot.lane.b32.xlu0 %v66, 20
    %v68 = vpop.permute.xlu0 %67
    %vm69 = vcmask 195744
    %70 = vst.msk [vmem:[#allocation0] sm:$0x1] %vm69, %v68
    %s71 = scalar_lea.vmem %s0, 4
    %v72 = vld [vmem:[%s71] sm:$0x1]
    %73 = vrot.lane.b32.xlu0 %v72, 16
    %v74 = vpop.permute.xlu0 %73
    %vm75 = vcmask 162944
    %76 = vst.msk [vmem:[#allocation0] sm:$0x1] %vm75, %v74
    %s77 = scalar_lea.vmem %s0, 3
    %v78 = vld [vmem:[%s77] sm:$0x1]
    %79 = vrot.lane.b32.xlu0 %v78, 12
    %v80 = vpop.permute.xlu0 %79
    %vm81 = vcmask 130144
    %82 = vst.msk [vmem:[#allocation0] sm:$0x1] %vm81, %v80
    %s83 = scalar_lea.vmem %s0, 2
    %v84 = vld [vmem:[%s83] sm:$0x1]
    %85 = vrot.lane.b32.xlu0 %v84, 8
    %v86 = vpop.permute.xlu0 %85
    %vm87 = vcmask 97344
    %88 = vst.msk [vmem:[#allocation0] sm:$0x1] %vm87, %v86
    %s89 = scalar_lea.vmem %s0, 1
    %v90 = vld [vmem:[%s89] sm:$0x1]
    %91 = vrot.lane.b32.xlu0 %v90, 4
    %v92 = vpop.permute.xlu0 %91
    %vm93 = vcmask 64544
    %94 = vst.msk [vmem:[#allocation0] sm:$0x1] %vm93, %v92
    %s96 = sshll.u32 1, 1
    %s97 = ssub.s32 %s96, 1
    %v99 = vld [vmem:[#allocation0] sm:%s97]
    %s100 = sshll.u32 1, 1
    %s101 = ssub.s32 %s100, 1
    %102 = vst [vmem:[%s1] sm:%s101] %v99

// kernel: _lambda_.1
$region0: #{_lambda_.1}
  #allocation0 [shape = 'u32[]', space=smem, size = 0x4, offset = 0x4, fixed_abs, tag = 'smem constant byte address 0x4 - core index']
  #allocation1 [shape = 'u32[144,128]{1,0:T(1,128)}', space=vmem, size = 0x12000, scoped, tag = 'internal scratch']
  %s0 = inlined_call_operand.vmem [shape: f32[36,64], index: 0, kind: input, shape index: {}]
  %s1 = inlined_call_operand.vmem [shape: bf16[3,64,64], index: 1, kind: input, shape index: {}]
  %s2 = inlined_call_operand.vmem [shape: bf16[3,64,64], index: 2, kind: input, shape index: {}]
  %s3 = inlined_call_operand.vmem [shape: f32[4,64], index: 3, kind: input, shape index: {}]
  %s4 = inlined_call_operand.vmem [shape: f32[36,64], index: 4, kind: output, shape index: {}]
  %s5 = sld [smem:[#allocation0]]
  $region26: #{_lambda_.1} parent=0
    _
  %s7 = ssub.s32 1, %s5
  %s8 = scalar_select 0, %s7, %s5
  // Predicated region
  $region2: #{_lambda_.1} parent=0 // pred_check
    _
  $region3: #{_lambda_.1} parent=0 // pred_check_branch
    %10 = sbr.rel (0) target = $region5
  $region4: #{_lambda_.1} parent=0 // pred_region
    _
  $region5: #{_lambda_.1} parent=0 // pred_fallthru
    _
  // Predicated region
  $region6: #{_lambda_.1} parent=0 // pred_check
    _
  $region7: #{_lambda_.1} parent=0 // pred_check_branch
    %12 = sbr.rel (0) target = $region9
  $region8: #{_lambda_.1} parent=0 // pred_region
    _
  $region9: #{_lambda_.1} parent=0 // pred_fallthru
    _
  // Predicated region
  $region10: #{_lambda_.1} parent=0 // pred_check
    _
  $region11: #{_lambda_.1} parent=0 // pred_check_branch
    %14 = sbr.rel (0) target = $region13
  $region12: #{_lambda_.1} parent=0 // pred_region
    _
  $region13: #{_lambda_.1} parent=0 // pred_fallthru
    _
  // Predicated region
  $region14: #{_lambda_.1} parent=0 // pred_check
    _
  $region15: #{_lambda_.1} parent=0 // pred_check_branch
    %16 = sbr.rel (0) target = $region17
  $region16: #{_lambda_.1} parent=0 // pred_region
    _
  $region17: #{_lambda_.1} parent=0 // pred_fallthru
    _
  %v18 = vld [vmem:[%s0] sm:$0xff]
  %v19 = vld [vmem:[%s0 + $0x8] sm:$0xff]
  %v20 = vld [vmem:[%s0 + $0x10] sm:$0xff]
  %v21 = vld [vmem:[%s0 + $0x18] sm:$0xff]
  %v22 = vld [vmem:[%s0 + $0x20] sm:$0xf]
  %v23 = vpack.c.bf16 %v19, %v18
  %v24 = vpack.c.bf16 %v21, %v20
  %v25 = vpack.c.bf16 %v22, %v22
  %v26 = vld [vmem:[%s3] sm:$0xf]
  %v27 = vlaneseq
  %v28 = vshrl.u32 %v27, 7
  %v29 = vadd.s32 %v28, 8
  %v30 = vadd.s32 %v28, 16
  %v31 = vadd.s32 %v28, 24
  %v32 = vadd.s32 %v28, 32
  %vm33 = vcmp.lt.s32.totalorder %v28, 0
  %v34 = vsub.s32 0, %v28
  %v35 = vsel %vm33, %v34, %v28
  %v36 = vmul.u32.u64.compose %v35, 3817748708
  %v37 = vextract.low.u32 %v36
  %v38 = vextract.high.u32 %v36
  %v39 = vshrl.u32 %v38, 4
  %v40 = vmul.u32 %v39, 18
  %v41 = vsub.s32 %v35, %v40
  %v42 = vsub.s32 0, %v41
  %v43 = vsel %vm33, %v42, %v41
  %vm44 = vcmp.lt.s32.totalorder %v29, 0
  %v45 = vsub.s32 0, %v29
  %v46 = vsel %vm44, %v45, %v29
  %v47 = vmul.u32.u64.compose %v46, 3817748708
  %v48 = vextract.low.u32 %v47
  %v49 = vextract.high.u32 %v47
  %v50 = vshrl.u32 %v49, 4
  %v51 = vmul.u32 %v50, 18
  %v52 = vsub.s32 %v46, %v51
  %v53 = vsub.s32 0, %v52
  %v54 = vsel %vm44, %v53, %v52
  %vm55 = vcmp.lt.s32.totalorder %v30, 0
  %v56 = vsub.s32 0, %v30
  %v57 = vsel %vm55, %v56, %v30
  %v58 = vmul.u32.u64.compose %v57, 3817748708
  %v59 = vextract.low.u32 %v58
  %v60 = vextract.high.u32 %v58
  %v61 = vshrl.u32 %v60, 4
  %v62 = vmul.u32 %v61, 18
  %v63 = vsub.s32 %v57, %v62
  %v64 = vsub.s32 0, %v63
  %v65 = vsel %vm55, %v64, %v63
  %vm66 = vcmp.lt.s32.totalorder %v31, 0
  %v67 = vsub.s32 0, %v31
  %v68 = vsel %vm66, %v67, %v31
  %v69 = vmul.u32.u64.compose %v68, 3817748708
  %v70 = vextract.low.u32 %v69
  %v71 = vextract.high.u32 %v69
  %v72 = vshrl.u32 %v71, 4
  %v73 = vmul.u32 %v72, 18
  %v74 = vsub.s32 %v68, %v73
  %v75 = vsub.s32 0, %v74
  %v76 = vsel %vm66, %v75, %v74
  %vm77 = vcmp.lt.s32.totalorder %v32, 0
  %v78 = vsub.s32 0, %v32
  %v79 = vsel %vm77, %v78, %v32
  %v80 = vmul.u32.u64.compose %v79, 3817748708
  %v81 = vextract.low.u32 %v80
  %v82 = vextract.high.u32 %v80
  %v83 = vshrl.u32 %v82, 4
  %v84 = vmul.u32 %v83, 18
  %v85 = vsub.s32 %v79, %v84
  %v86 = vsub.s32 0, %v85
  %v87 = vsel %vm77, %v86, %v85
  %vm88 = vcmp.ne.s32.totalorder %v43, 0
  %vm89 = vcmp.ne.s32.totalorder %v54, 0
  %vm90 = vcmp.ne.s32.totalorder %v65, 0
  %vm91 = vcmp.ne.s32.totalorder %v76, 0
  %vm92 = vcmp.ne.s32.totalorder %v87, 0
  %vm93 = vcmp.lt.s32.totalorder %v43, 0
  %vm94 = vcmp.lt.s32.totalorder %v54, 0
  %vm95 = vcmp.lt.s32.totalorder %v65, 0
  %vm96 = vcmp.lt.s32.totalorder %v76, 0
  %vm97 = vcmp.lt.s32.totalorder %v87, 0
  %vm98 = vmand %vm93, %vm88
  %vm99 = vmand %vm94, %vm89
  %vm100 = vmand %vm95, %vm90
  %vm101 = vmand %vm96, %vm91
  %vm102 = vmand %vm97, %vm92
  %v103 = vadd.s32 %v43, 18
  %v104 = vadd.s32 %v54, 18
  %v105 = vadd.s32 %v65, 18
  %v106 = vadd.s32 %v76, 18
  %v107 = vadd.s32 %v87, 18
  %v108 = vsel %vm98, %v103, %v43
  %v109 = vsel %vm99, %v104, %v54
  %v110 = vsel %vm100, %v105, %v65
  %v111 = vsel %vm101, %v106, %v76
  %v112 = vsel %vm102, %v107, %v87
  %vm113 = vcmp.ne.s32.totalorder %v108, 0
  %vm114 = vcmp.ne.s32.totalorder %v109, 0
  %vm115 = vcmp.ne.s32.totalorder %v110, 0
  %vm116 = vcmp.ne.s32.totalorder %v111, 0
  %vm117 = vcmp.ne.s32.totalorder %v112, 0
  %vm118 = vcmp.ne.s32.totalorder %v108, 17
  %vm119 = vcmp.ne.s32.totalorder %v109, 17
  %vm120 = vcmp.ne.s32.totalorder %v110, 17
  %vm121 = vcmp.ne.s32.totalorder %v111, 17
  %vm122 = vcmp.ne.s32.totalorder %v112, 17
  %vm123 = vmand %vm113, %vm118
  %vm124 = vmand %vm114, %vm119
  %vm125 = vmand %vm115, %vm120
  %vm126 = vmand %vm116, %vm121
  %vm127 = vmand %vm117, %vm122
  %v128 = vld [vmem:[%s1] sm:$0xf]
  %v129 = vld [vmem:[%s1 + $0x4] sm:$0xf]
  %v130 = vld [vmem:[%s1 + $0x8] sm:$0xf]
  %v131 = vld [vmem:[%s1 + $0xc] sm:$0xf]
  %v132 = vld [vmem:[%s1 + $0x10] sm:$0xf]
  %v133 = vld [vmem:[%s1 + $0x14] sm:$0xf]
  %v134 = vld [vmem:[%s1 + $0x18] sm:$0xf]
  %v135 = vld [vmem:[%s1 + $0x1c] sm:$0xf]
  %v144 = vunpack.c.l.b16 %v128
  %v145 = vunpack.c.l.b16 %v129
  %v146 = vunpack.c.l.b16 %v130
  %v147 = vunpack.c.l.b16 %v131
  %v148 = vunpack.c.l.b16 %v132
  %v149 = vunpack.c.l.b16 %v133
  %v150 = vunpack.c.l.b16 %v134
  %v151 = vunpack.c.l.b16 %v135
  %v152 = vpack.c.b16 %v145, %v144
  %v153 = vpack.c.b16 %v147, %v146
  %v154 = vpack.c.b16 %v149, %v148
  %v155 = vpack.c.b16 %v151, %v150
  %vm160 = vcmask 523264
  %v162 = vsel %vm160, %v23, 0
  %v165 = vsel %vm160, %v24, 0
  %v168 = vsel %vm160, %v25, 0
  %170 = vmatprep.subr.bf16.mxu0 0
  %171 = vmatpush1.bf16.msra.mxu0 0
  %172 = vmatprep.subr.bf16.mxu0 0
  %173 = vmatpush1.bf16.msra.mxu0 0
  %174 = vmatprep.subr.bf16.mxu0 0
  %175 = vmatpush1.bf16.msra.mxu0 0
  %176 = vmatprep.subr.bf16.mxu0 0
  %177 = vmatpush1.bf16.msra.mxu0 0
  %178 = vmatprep.subr.bf16.mxu0 0
  %179 = vmatpush1.bf16.msra.mxu0 %v155
  %180 = vmatprep.subr.bf16.mxu0 0
  %181 = vmatpush1.bf16.msra.mxu0 %v154
  %182 = vmatprep.subr.bf16.mxu0 0
  %183 = vmatpush1.bf16.msra.mxu0 %v153
  %184 = vmatprep.subr.bf16.mxu0 0
  %185 = vmatpush1.bf16.msra.mxu0 %v152
  %186 = vmatprep.subr.bf16.mxu0 0
  %187 = vmatpush2.bf16.msra.mxu0 0
  %188 = vmatprep.subr.bf16.mxu0 0
  %189 = vmatpush2.bf16.msra.mxu0 0
  %190 = vmatprep.subr.bf16.mxu0 0
  %191 = vmatpush2.bf16.msra.mxu0 0
  %192 = vmatprep.subr.bf16.mxu0 0
  %193 = vmatpush2.bf16.msra.mxu0 0
  %194 = vmatprep.subr.bf16.mxu0 0
  %195 = vmatpush2.bf16.msra.mxu0 0
  %196 = vmatprep.subr.bf16.mxu0 0
  %197 = vmatpush2.bf16.msra.mxu0 0
  %198 = vmatprep.subr.bf16.mxu0 0
  %199 = vmatpush2.bf16.msra.mxu0 0
  %200 = vmatprep.subr.bf16.mxu0 0
  %201 = vmatpush2.bf16.msra.mxu0 0
  %202 = vmatprep.mubr.bf16.mxu0 0
  %203 = vmatmul.mubr.bf16.gmra.mxu0 %v162
  %v204 = vpop.f32.mrf.mxu0
  %v205 = vadd.f32 0.0, %v204
  %v206 = vpop.f32.mrf.mxu0
  %v207 = vpop.f32.mrf.mxu0
  %v208 = vadd.f32 0.0, %v207
  %v209 = vpop.f32.mrf.mxu0
  %210 = vmatprep.mubr.bf16.mxu0 0
  %211 = vmatmul.mubr.bf16.gmra.mxu0 %v165
  %v212 = vpop.f32.mrf.mxu0
  %v213 = vadd.f32 0.0, %v212
  %v214 = vpop.f32.mrf.mxu0
  %v215 = vpop.f32.mrf.mxu0
  %v216 = vadd.f32 0.0, %v215
  %v217 = vpop.f32.mrf.mxu0
  %218 = vmatprep.mubr.bf16.mxu0 0
  %219 = vmatmul.mubr.bf16.gmra.mxu0 %v168
  %v220 = vpop.f32.mrf.mxu0
  %v221 = vadd.f32 0.0, %v220
  %v222 = vpop.f32.mrf.mxu0
  %v223 = vpop.f32.mrf.mxu0
  %v224 = vpop.f32.mrf.mxu0
  %225 = vdwg.mxu0
  %s226 = scalar_lea.vmem %s1, 32
  %v227 = vld [vmem:[%s226] sm:$0xf]
  %v228 = vld [vmem:[%s226 + $0x4] sm:$0xf]
  %v229 = vld [vmem:[%s226 + $0x8] sm:$0xf]
  %v230 = vld [vmem:[%s226 + $0xc] sm:$0xf]
  %v231 = vld [vmem:[%s226 + $0x10] sm:$0xf]
  %v232 = vld [vmem:[%s226 + $0x14] sm:$0xf]
  %v233 = vld [vmem:[%s226 + $0x18] sm:$0xf]
  %v234 = vld [vmem:[%s226 + $0x1c] sm:$0xf]
  %v243 = vunpack.c.l.b16 %v227
  %v244 = vunpack.c.l.b16 %v228
  %v245 = vunpack.c.l.b16 %v229
  %v246 = vunpack.c.l.b16 %v230
  %v247 = vunpack.c.l.b16 %v231
  %v248 = vunpack.c.l.b16 %v232
  %v249 = vunpack.c.l.b16 %v233
  %v250 = vunpack.c.l.b16 %v234
  %v251 = vpack.c.b16 %v244, %v243
  %v252 = vpack.c.b16 %v246, %v245
  %v253 = vpack.c.b16 %v248, %v247
  %v254 = vpack.c.b16 %v250, %v249
  %259 = vmatprep.subr.bf16.mxu0 0
  %260 = vmatpush1.bf16.msra.mxu0 0
  %261 = vmatprep.subr.bf16.mxu0 0
  %262 = vmatpush1.bf16.msra.mxu0 0
  %263 = vmatprep.subr.bf16.mxu0 0
  %264 = vmatpush1.bf16.msra.mxu0 0
  %265 = vmatprep.subr.bf16.mxu0 0
  %266 = vmatpush1.bf16.msra.mxu0 0
  %267 = vmatprep.subr.bf16.mxu0 0
  %268 = vmatpush1.bf16.msra.mxu0 %v254
  %269 = vmatprep.subr.bf16.mxu0 0
  %270 = vmatpush1.bf16.msra.mxu0 %v253
  %271 = vmatprep.subr.bf16.mxu0 0
  %272 = vmatpush1.bf16.msra.mxu0 %v252
  %273 = vmatprep.subr.bf16.mxu0 0
  %274 = vmatpush1.bf16.msra.mxu0 %v251
  %275 = vmatprep.subr.bf16.mxu0 0
  %276 = vmatpush2.bf16.msra.mxu0 0
  %277 = vmatprep.subr.bf16.mxu0 0
  %278 = vmatpush2.bf16.msra.mxu0 0
  %279 = vmatprep.subr.bf16.mxu0 0
  %280 = vmatpush2.bf16.msra.mxu0 0
  %281 = vmatprep.subr.bf16.mxu0 0
  %282 = vmatpush2.bf16.msra.mxu0 0
  %283 = vmatprep.subr.bf16.mxu0 0
  %284 = vmatpush2.bf16.msra.mxu0 0
  %285 = vmatprep.subr.bf16.mxu0 0
  %286 = vmatpush2.bf16.msra.mxu0 0
  %287 = vmatprep.subr.bf16.mxu0 0
  %288 = vmatpush2.bf16.msra.mxu0 0
  %289 = vmatprep.subr.bf16.mxu0 0
  %290 = vmatpush2.bf16.msra.mxu0 0
  %291 = vmatprep.mubr.bf16.mxu0 0
  %292 = vmatmul.mubr.bf16.gmra.mxu0 %v162
  %v293 = vpop.f32.mrf.mxu0
  %v294 = vadd.f32 0.0, %v293
  %v295 = vpop.f32.mrf.mxu0
  %v296 = vpop.f32.mrf.mxu0
  %v297 = vadd.f32 0.0, %v296
  %v298 = vpop.f32.mrf.mxu0
  %299 = vmatprep.mubr.bf16.mxu0 0
  %300 = vmatmul.mubr.bf16.gmra.mxu0 %v165
  %v301 = vpop.f32.mrf.mxu0
  %v302 = vadd.f32 0.0, %v301
  %v303 = vpop.f32.mrf.mxu0
  %v304 = vpop.f32.mrf.mxu0
  %v305 = vadd.f32 0.0, %v304
  %v306 = vpop.f32.mrf.mxu0
  %307 = vmatprep.mubr.bf16.mxu0 0
  %308 = vmatmul.mubr.bf16.gmra.mxu0 %v168
  %v309 = vpop.f32.mrf.mxu0
  %v310 = vadd.f32 0.0, %v309
  %v311 = vpop.f32.mrf.mxu0
  %v312 = vpop.f32.mrf.mxu0
  %v313 = vpop.f32.mrf.mxu0
  %314 = vdwg.mxu0
  %s315 = scalar_lea.vmem %s1, 64
  %v316 = vld [vmem:[%s315] sm:$0xf]
  %v317 = vld [vmem:[%s315 + $0x4] sm:$0xf]
  %v318 = vld [vmem:[%s315 + $0x8] sm:$0xf]
  %v319 = vld [vmem:[%s315 + $0xc] sm:$0xf]
  %v320 = vld [vmem:[%s315 + $0x10] sm:$0xf]
  %v321 = vld [vmem:[%s315 + $0x14] sm:$0xf]
  %v322 = vld [vmem:[%s315 + $0x18] sm:$0xf]
  %v323 = vld [vmem:[%s315 + $0x1c] sm:$0xf]
  %v332 = vunpack.c.l.b16 %v316
  %v333 = vunpack.c.l.b16 %v317
  %v334 = vunpack.c.l.b16 %v318
  %v335 = vunpack.c.l.b16 %v319
  %v336 = vunpack.c.l.b16 %v320
  %v337 = vunpack.c.l.b16 %v321
  %v338 = vunpack.c.l.b16 %v322
  %v339 = vunpack.c.l.b16 %v323
  %v340 = vpack.c.b16 %v333, %v332
  %v341 = vpack.c.b16 %v335, %v334
  %v342 = vpack.c.b16 %v337, %v336
  %v343 = vpack.c.b16 %v339, %v338
  %348 = vmatprep.subr.bf16.mxu0 0
  %349 = vmatpush1.bf16.msra.mxu0 0
  %350 = vmatprep.subr.bf16.mxu0 0
  %351 = vmatpush1.bf16.msra.mxu0 0
  %352 = vmatprep.subr.bf16.mxu0 0
  %353 = vmatpush1.bf16.msra.mxu0 0
  %354 = vmatprep.subr.bf16.mxu0 0
  %355 = vmatpush1.bf16.msra.mxu0 0
  %356 = vmatprep.subr.bf16.mxu0 0
  %357 = vmatpush1.bf16.msra.mxu0 %v343
  %358 = vmatprep.subr.bf16.mxu0 0
  %359 = vmatpush1.bf16.msra.mxu0 %v342
  %360 = vmatprep.subr.bf16.mxu0 0
  %361 = vmatpush1.bf16.msra.mxu0 %v341
  %362 = vmatprep.subr.bf16.mxu0 0
  %363 = vmatpush1.bf16.msra.mxu0 %v340
  %364 = vmatprep.subr.bf16.mxu0 0
  %365 = vmatpush2.bf16.msra.mxu0 0
  %366 = vmatprep.subr.bf16.mxu0 0
  %367 = vmatpush2.bf16.msra.mxu0 0
  %368 = vmatprep.subr.bf16.mxu0 0
  %369 = vmatpush2.bf16.msra.mxu0 0
  %370 = vmatprep.subr.bf16.mxu0 0
  %371 = vmatpush2.bf16.msra.mxu0 0
  %372 = vmatprep.subr.bf16.mxu0 0
  %373 = vmatpush2.bf16.msra.mxu0 0
  %374 = vmatprep.subr.bf16.mxu0 0
  %375 = vmatpush2.bf16.msra.mxu0 0
  %376 = vmatprep.subr.bf16.mxu0 0
  %377 = vmatpush2.bf16.msra.mxu0 0
  %378 = vmatprep.subr.bf16.mxu0 0
  %379 = vmatpush2.bf16.msra.mxu0 0
  %380 = vmatprep.mubr.bf16.mxu0 0
  %381 = vmatmul.mubr.bf16.gmra.mxu0 %v162
  %v382 = vpop.f32.mrf.mxu0
  %v383 = vadd.f32 0.0, %v382
  %v384 = vpop.f32.mrf.mxu0
  %v385 = vpop.f32.mrf.mxu0
  %v386 = vadd.f32 0.0, %v385
  %v387 = vpop.f32.mrf.mxu0
  %388 = vmatprep.mubr.bf16.mxu0 0
  %389 = vmatmul.mubr.bf16.gmra.mxu0 %v165
  %v390 = vpop.f32.mrf.mxu0
  %v391 = vadd.f32 0.0, %v390
  %v392 = vpop.f32.mrf.mxu0
  %v393 = vpop.f32.mrf.mxu0
  %v394 = vadd.f32 0.0, %v393
  %v395 = vpop.f32.mrf.mxu0
  %396 = vmatprep.mubr.bf16.mxu0 0
  %397 = vmatmul.mubr.bf16.gmra.mxu0 %v168
  %v398 = vpop.f32.mrf.mxu0
  %v399 = vadd.f32 0.0, %v398
  %v400 = vpop.f32.mrf.mxu0
  %v401 = vpop.f32.mrf.mxu0
  %v402 = vpop.f32.mrf.mxu0
  %403 = vdwg.mxu0
  %vm409 = vcmask 1040384
  %v410 = vrot.slane %v205, 7
  %v411 = vrot.slane %v208, 7
  %v412 = vsel %vm409, %v410, %v411
  %v413 = vrot.slane %v213, 7
  %v414 = vsel %vm409, %v411, %v413
  %v415 = vrot.slane %v216, 7
  %v416 = vsel %vm409, %v413, %v415
  %v417 = vrot.slane %v221, 7
  %v418 = vsel %vm409, %v415, %v417
  %v424 = vsel %vm409, 0.0, %v410
  %v425 = vadd.f32 %v424, %v294
  %v426 = vadd.f32 %v412, %v297
  %v427 = vadd.f32 %v414, %v302
  %v428 = vadd.f32 %v416, %v305
  %v429 = vadd.f32 %v418, %v310
  %vm435 = vcmask 1046528
  %v436 = vrot.slane %v383, 1
  %v437 = vrot.slane %v386, 1
  %v438 = vsel %vm435, %v436, %v437
  %v439 = vrot.slane %v391, 1
  %v440 = vsel %vm435, %v437, %v439
  %v441 = vrot.slane %v394, 1
  %v442 = vsel %vm435, %v439, %v441
  %v443 = vrot.slane %v399, 1
  %v444 = vsel %vm435, %v441, %v443
  %vm450 = vcmask 1042432
  %v451 = vsel %vm450, %v443, 0.0
  %v452 = vadd.f32 %v425, %v438
  %v453 = vadd.f32 %v426, %v440
  %v454 = vadd.f32 %v427, %v442
  %v455 = vadd.f32 %v428, %v444
  %v456 = vadd.f32 %v429, %v451
  %v457 = vlaneseq
  %v458 = vshrl.u32 %v457, 7
  %v459 = vsub.s32 0, %v458
  %v460 = vrot.slane %v26, %v459
  %v461 = vmul.f32 %v452, %v460
  %v462 = vmul.f32 %v453, %v460
  %v463 = vmul.f32 %v454, %v460
  %v464 = vmul.f32 %v455, %v460
  %v465 = vmul.f32 %v456, %v460
  %v466 = vlaneseq
  %v467 = vshrl.u32 %v466, 7
  %v468 = vsub.s32 1, %v467
  %v469 = vrot.slane %v26, %v468
  %v470 = vadd.f32 %v461, %v469
  %v471 = vadd.f32 %v462, %v469
  %v472 = vadd.f32 %v463, %v469
  %v473 = vadd.f32 %v464, %v469
  %v474 = vadd.f32 %v465, %v469
  %vm475 = vcmp.ge.f32.partialorder %v470, 1.0
  %vm476 = vcmp.ge.f32.partialorder %v471, 1.0
  %vm477 = vcmp.ge.f32.partialorder %v472, 1.0
  %vm478 = vcmp.ge.f32.partialorder %v473, 1.0
  %vm479 = vcmp.ge.f32.partialorder %v474, 1.0
  %v480 = vsel %vm123, 1, 0
  %v481 = vsel %vm124, 1, 0
  %v482 = vsel %vm125, 1, 0
  %v483 = vsel %vm126, 1, 0
  %v484 = vsel %vm127, 1, 0
  %vm485 = vcmp.eq.s32.totalorder %v480, 1
  %vm486 = vcmp.eq.s32.totalorder %v481, 1
  %vm487 = vcmp.eq.s32.totalorder %v482, 1
  %vm488 = vcmp.eq.s32.totalorder %v483, 1
  %vm489 = vcmp.eq.s32.totalorder %v484, 1
  %vm490 = vmand %vm475, %vm485
  %vm491 = vmand %vm476, %vm486
  %vm492 = vmand %vm477, %vm487
  %vm493 = vmand %vm478, %vm488
  %vm494 = vmand %vm479, %vm489
  %v495 = vsel %vm490, 1, 0
  %v496 = vsel %vm491, 1, 0
  %v497 = vsel %vm492, 1, 0
  %v498 = vsel %vm493, 1, 0
  %v499 = vsel %vm494, 1, 0
  %v500 = vcvt.s32.f32 %v495
  %v501 = vcvt.s32.f32 %v496
  %v502 = vcvt.s32.f32 %v497
  %v503 = vcvt.s32.f32 %v498
  %v504 = vcvt.s32.f32 %v499
  %v505 = vpack.c.bf16 %v501, %v500
  %v506 = vpack.c.bf16 %v503, %v502
  %v507 = vpack.c.bf16 %v504, %v504
  %v508 = vld [vmem:[%s2] sm:$0xf]
  %v509 = vld [vmem:[%s2 + $0x4] sm:$0xf]
  %v510 = vld [vmem:[%s2 + $0x8] sm:$0xf]
  %v511 = vld [vmem:[%s2 + $0xc] sm:$0xf]
  %v512 = vld [vmem:[%s2 + $0x10] sm:$0xf]
  %v513 = vld [vmem:[%s2 + $0x14] sm:$0xf]
  %v514 = vld [vmem:[%s2 + $0x18] sm:$0xf]
  %v515 = vld [vmem:[%s2 + $0x1c] sm:$0xf]
  %v524 = vunpack.c.l.b16 %v508
  %v525 = vunpack.c.l.b16 %v509
  %v526 = vunpack.c.l.b16 %v510
  %v527 = vunpack.c.l.b16 %v511
  %v528 = vunpack.c.l.b16 %v512
  %v529 = vunpack.c.l.b16 %v513
  %v530 = vunpack.c.l.b16 %v514
  %v531 = vunpack.c.l.b16 %v515
  %v532 = vpack.c.b16 %v525, %v524
  %v533 = vpack.c.b16 %v527, %v526
  %v534 = vpack.c.b16 %v529, %v528
  %v535 = vpack.c.b16 %v531, %v530
  %v541 = vsel %vm160, %v505, 0
  %v544 = vsel %vm160, %v506, 0
  %v547 = vsel %vm160, %v507, 0
  %549 = vmatprep.subr.bf16.mxu0 0
  %550 = vmatpush1.bf16.msra.mxu0 0
  %551 = vmatprep.subr.bf16.mxu0 0
  %552 = vmatpush1.bf16.msra.mxu0 0
  %553 = vmatprep.subr.bf16.mxu0 0
  %554 = vmatpush1.bf16.msra.mxu0 0
  %555 = vmatprep.subr.bf16.mxu0 0
  %556 = vmatpush1.bf16.msra.mxu0 0
  %557 = vmatprep.subr.bf16.mxu0 0
  %558 = vmatpush1.bf16.msra.mxu0 %v535
  %559 = vmatprep.subr.bf16.mxu0 0
  %560 = vmatpush1.bf16.msra.mxu0 %v534
  %561 = vmatprep.subr.bf16.mxu0 0
  %562 = vmatpush1.bf16.msra.mxu0 %v533
  %563 = vmatprep.subr.bf16.mxu0 0
  %564 = vmatpush1.bf16.msra.mxu0 %v532
  %565 = vmatprep.subr.bf16.mxu0 0
  %566 = vmatpush2.bf16.msra.mxu0 0
  %567 = vmatprep.subr.bf16.mxu0 0
  %568 = vmatpush2.bf16.msra.mxu0 0
  %569 = vmatprep.subr.bf16.mxu0 0
  %570 = vmatpush2.bf16.msra.mxu0 0
  %571 = vmatprep.subr.bf16.mxu0 0
  %572 = vmatpush2.bf16.msra.mxu0 0
  %573 = vmatprep.subr.bf16.mxu0 0
  %574 = vmatpush2.bf16.msra.mxu0 0
  %575 = vmatprep.subr.bf16.mxu0 0
  %576 = vmatpush2.bf16.msra.mxu0 0
  %577 = vmatprep.subr.bf16.mxu0 0
  %578 = vmatpush2.bf16.msra.mxu0 0
  %579 = vmatprep.subr.bf16.mxu0 0
  %580 = vmatpush2.bf16.msra.mxu0 0
  %581 = vmatprep.mubr.bf16.mxu0 0
  %582 = vmatmul.mubr.bf16.gmra.mxu0 %v541
  %v583 = vpop.f32.mrf.mxu0
  %v584 = vadd.f32 0.0, %v583
  %v585 = vpop.f32.mrf.mxu0
  %v586 = vpop.f32.mrf.mxu0
  %v587 = vadd.f32 0.0, %v586
  %v588 = vpop.f32.mrf.mxu0
  %589 = vmatprep.mubr.bf16.mxu0 0
  %590 = vmatmul.mubr.bf16.gmra.mxu0 %v544
  %v591 = vpop.f32.mrf.mxu0
  %v592 = vadd.f32 0.0, %v591
  %v593 = vpop.f32.mrf.mxu0
  %v594 = vpop.f32.mrf.mxu0
  %v595 = vadd.f32 0.0, %v594
  %v596 = vpop.f32.mrf.mxu0
  %597 = vmatprep.mubr.bf16.mxu0 0
  %598 = vmatmul.mubr.bf16.gmra.mxu0 %v547
  %v599 = vpop.f32.mrf.mxu0
  %v600 = vadd.f32 0.0, %v599
  %v601 = vpop.f32.mrf.mxu0
  %v602 = vpop.f32.mrf.mxu0
  %v603 = vpop.f32.mrf.mxu0
  %604 = vdwg.mxu0
  %s605 = scalar_lea.vmem %s2, 32
  %v606 = vld [vmem:[%s605] sm:$0xf]
  %v607 = vld [vmem:[%s605 + $0x4] sm:$0xf]
  %v608 = vld [vmem:[%s605 + $0x8] sm:$0xf]
  %v609 = vld [vmem:[%s605 + $0xc] sm:$0xf]
  %v610 = vld [vmem:[%s605 + $0x10] sm:$0xf]
  %v611 = vld [vmem:[%s605 + $0x14] sm:$0xf]
  %v612 = vld [vmem:[%s605 + $0x18] sm:$0xf]
  %v613 = vld [vmem:[%s605 + $0x1c] sm:$0xf]
  %v622 = vunpack.c.l.b16 %v606
  %v623 = vunpack.c.l.b16 %v607
  %v624 = vunpack.c.l.b16 %v608
  %v625 = vunpack.c.l.b16 %v609
  %v626 = vunpack.c.l.b16 %v610
  %v627 = vunpack.c.l.b16 %v611
  %v628 = vunpack.c.l.b16 %v612
  %v629 = vunpack.c.l.b16 %v613
  %v630 = vpack.c.b16 %v623, %v622
  %v631 = vpack.c.b16 %v625, %v624
  %v632 = vpack.c.b16 %v627, %v626
  %v633 = vpack.c.b16 %v629, %v628
  %638 = vmatprep.subr.bf16.mxu0 0
  %639 = vmatpush1.bf16.msra.mxu0 0
  %640 = vmatprep.subr.bf16.mxu0 0
  %641 = vmatpush1.bf16.msra.mxu0 0
  %642 = vmatprep.subr.bf16.mxu0 0
  %643 = vmatpush1.bf16.msra.mxu0 0
  %644 = vmatprep.subr.bf16.mxu0 0
  %645 = vmatpush1.bf16.msra.mxu0 0
  %646 = vmatprep.subr.bf16.mxu0 0
  %647 = vmatpush1.bf16.msra.mxu0 %v633
  %648 = vmatprep.subr.bf16.mxu0 0
  %649 = vmatpush1.bf16.msra.mxu0 %v632
  %650 = vmatprep.subr.bf16.mxu0 0
  %651 = vmatpush1.bf16.msra.mxu0 %v631
  %652 = vmatprep.subr.bf16.mxu0 0
  %653 = vmatpush1.bf16.msra.mxu0 %v630
  %654 = vmatprep.subr.bf16.mxu0 0
  %655 = vmatpush2.bf16.msra.mxu0 0
  %656 = vmatprep.subr.bf16.mxu0 0
  %657 = vmatpush2.bf16.msra.mxu0 0
  %658 = vmatprep.subr.bf16.mxu0 0
  %659 = vmatpush2.bf16.msra.mxu0 0
  %660 = vmatprep.subr.bf16.mxu0 0
  %661 = vmatpush2.bf16.msra.mxu0 0
  %662 = vmatprep.subr.bf16.mxu0 0
  %663 = vmatpush2.bf16.msra.mxu0 0
  %664 = vmatprep.subr.bf16.mxu0 0
  %665 = vmatpush2.bf16.msra.mxu0 0
  %666 = vmatprep.subr.bf16.mxu0 0
  %667 = vmatpush2.bf16.msra.mxu0 0
  %668 = vmatprep.subr.bf16.mxu0 0
  %669 = vmatpush2.bf16.msra.mxu0 0
  %670 = vmatprep.mubr.bf16.mxu0 0
  %671 = vmatmul.mubr.bf16.gmra.mxu0 %v541
  %v672 = vpop.f32.mrf.mxu0
  %v673 = vadd.f32 0.0, %v672
  %v674 = vpop.f32.mrf.mxu0
  %v675 = vpop.f32.mrf.mxu0
  %v676 = vadd.f32 0.0, %v675
  %v677 = vpop.f32.mrf.mxu0
  %678 = vmatprep.mubr.bf16.mxu0 0
  %679 = vmatmul.mubr.bf16.gmra.mxu0 %v544
  %v680 = vpop.f32.mrf.mxu0
  %v681 = vadd.f32 0.0, %v680
  %v682 = vpop.f32.mrf.mxu0
  %v683 = vpop.f32.mrf.mxu0
  %v684 = vadd.f32 0.0, %v683
  %v685 = vpop.f32.mrf.mxu0
  %686 = vmatprep.mubr.bf16.mxu0 0
  %687 = vmatmul.mubr.bf16.gmra.mxu0 %v547
  %v688 = vpop.f32.mrf.mxu0
  %v689 = vadd.f32 0.0, %v688
  %v690 = vpop.f32.mrf.mxu0
  %v691 = vpop.f32.mrf.mxu0
  %v692 = vpop.f32.mrf.mxu0
  %693 = vdwg.mxu0
  %s694 = scalar_lea.vmem %s2, 64
  %v695 = vld [vmem:[%s694] sm:$0xf]
  %v696 = vld [vmem:[%s694 + $0x4] sm:$0xf]
  %v697 = vld [vmem:[%s694 + $0x8] sm:$0xf]
  %v698 = vld [vmem:[%s694 + $0xc] sm:$0xf]
  %v699 = vld [vmem:[%s694 + $0x10] sm:$0xf]
  %v700 = vld [vmem:[%s694 + $0x14] sm:$0xf]
  %v701 = vld [vmem:[%s694 + $0x18] sm:$0xf]
  %v702 = vld [vmem:[%s694 + $0x1c] sm:$0xf]
  %v711 = vunpack.c.l.b16 %v695
  %v712 = vunpack.c.l.b16 %v696
  %v713 = vunpack.c.l.b16 %v697
  %v714 = vunpack.c.l.b16 %v698
  %v715 = vunpack.c.l.b16 %v699
  %v716 = vunpack.c.l.b16 %v700
  %v717 = vunpack.c.l.b16 %v701
  %v718 = vunpack.c.l.b16 %v702
  %v719 = vpack.c.b16 %v712, %v711
  %v720 = vpack.c.b16 %v714, %v713
  %v721 = vpack.c.b16 %v716, %v715
  %v722 = vpack.c.b16 %v718, %v717
  %727 = vmatprep.subr.bf16.mxu0 0
  %728 = vmatpush1.bf16.msra.mxu0 0
  %729 = vmatprep.subr.bf16.mxu0 0
  %730 = vmatpush1.bf16.msra.mxu0 0
  %731 = vmatprep.subr.bf16.mxu0 0
  %732 = vmatpush1.bf16.msra.mxu0 0
  %733 = vmatprep.subr.bf16.mxu0 0
  %734 = vmatpush1.bf16.msra.mxu0 0
  %735 = vmatprep.subr.bf16.mxu0 0
  %736 = vmatpush1.bf16.msra.mxu0 %v722
  %737 = vmatprep.subr.bf16.mxu0 0
  %738 = vmatpush1.bf16.msra.mxu0 %v721
  %739 = vmatprep.subr.bf16.mxu0 0
  %740 = vmatpush1.bf16.msra.mxu0 %v720
  %741 = vmatprep.subr.bf16.mxu0 0
  %742 = vmatpush1.bf16.msra.mxu0 %v719
  %743 = vmatprep.subr.bf16.mxu0 0
  %744 = vmatpush2.bf16.msra.mxu0 0
  %745 = vmatprep.subr.bf16.mxu0 0
  %746 = vmatpush2.bf16.msra.mxu0 0
  %747 = vmatprep.subr.bf16.mxu0 0
  %748 = vmatpush2.bf16.msra.mxu0 0
  %749 = vmatprep.subr.bf16.mxu0 0
  %750 = vmatpush2.bf16.msra.mxu0 0
  %751 = vmatprep.subr.bf16.mxu0 0
  %752 = vmatpush2.bf16.msra.mxu0 0
  %753 = vmatprep.subr.bf16.mxu0 0
  %754 = vmatpush2.bf16.msra.mxu0 0
  %755 = vmatprep.subr.bf16.mxu0 0
  %756 = vmatpush2.bf16.msra.mxu0 0
  %757 = vmatprep.subr.bf16.mxu0 0
  %758 = vmatpush2.bf16.msra.mxu0 0
  %759 = vmatprep.mubr.bf16.mxu0 0
  %760 = vmatmul.mubr.bf16.gmra.mxu0 %v541
  %v761 = vpop.f32.mrf.mxu0
  %v762 = vadd.f32 0.0, %v761
  %v763 = vpop.f32.mrf.mxu0
  %v764 = vpop.f32.mrf.mxu0
  %v765 = vadd.f32 0.0, %v764
  %v766 = vpop.f32.mrf.mxu0
  %767 = vmatprep.mubr.bf16.mxu0 0
  %768 = vmatmul.mubr.bf16.gmra.mxu0 %v544
  %v769 = vpop.f32.mrf.mxu0
  %v770 = vadd.f32 0.0, %v769
  %v771 = vpop.f32.mrf.mxu0
  %v772 = vpop.f32.mrf.mxu0
  %v773 = vadd.f32 0.0, %v772
  %v774 = vpop.f32.mrf.mxu0
  %775 = vmatprep.mubr.bf16.mxu0 0
  %776 = vmatmul.mubr.bf16.gmra.mxu0 %v547
  %v777 = vpop.f32.mrf.mxu0
  %v778 = vadd.f32 0.0, %v777
  %v779 = vpop.f32.mrf.mxu0
  %v780 = vpop.f32.mrf.mxu0
  %v781 = vpop.f32.mrf.mxu0
  %782 = vdwg.mxu0
  %v788 = vrot.slane %v584, 7
  %v789 = vrot.slane %v587, 7
  %v790 = vsel %vm409, %v788, %v789
  %v791 = vrot.slane %v592, 7
  %v792 = vsel %vm409, %v789, %v791
  %v793 = vrot.slane %v595, 7
  %v794 = vsel %vm409, %v791, %v793
  %v795 = vrot.slane %v600, 7
  %v796 = vsel %vm409, %v793, %v795
  %v802 = vsel %vm409, 0.0, %v788
  %v803 = vadd.f32 %v802, %v673
  %v804 = vadd.f32 %v790, %v676
  %v805 = vadd.f32 %v792, %v681
  %v806 = vadd.f32 %v794, %v684
  %v807 = vadd.f32 %v796, %v689
  %v813 = vrot.slane %v762, 1
  %v814 = vrot.slane %v765, 1
  %v815 = vsel %vm435, %v813, %v814
  %v816 = vrot.slane %v770, 1
  %v817 = vsel %vm435, %v814, %v816
  %v818 = vrot.slane %v773, 1
  %v819 = vsel %vm435, %v816, %v818
  %v820 = vrot.slane %v778, 1
  %v821 = vsel %vm435, %v818, %v820
  %v827 = vsel %vm450, %v820, 0.0
  %v828 = vadd.f32 %v803, %v815
  %v829 = vadd.f32 %v804, %v817
  %v830 = vadd.f32 %v805, %v819
  %v831 = vadd.f32 %v806, %v821
  %v832 = vadd.f32 %v807, %v827
  %v833 = vlaneseq
  %v834 = vshrl.u32 %v833, 7
  %v835 = vsub.s32 2, %v834
  %v836 = vrot.slane %v26, %v835
  %v837 = vmul.f32 %v828, %v836
  %v838 = vmul.f32 %v829, %v836
  %v839 = vmul.f32 %v830, %v836
  %v840 = vmul.f32 %v831, %v836
  %v841 = vmul.f32 %v832, %v836
  %v842 = vlaneseq
  %v843 = vshrl.u32 %v842, 7
  %v844 = vsub.s32 3, %v843
  %v845 = vrot.slane %v26, %v844
  %v846 = vadd.f32 %v837, %v845
  %v847 = vadd.f32 %v838, %v845
  %v848 = vadd.f32 %v839, %v845
  %v849 = vadd.f32 %v840, %v845
  %v850 = vadd.f32 %v841, %v845
  %vm851 = vcmp.ge.f32.partialorder %v846, 1.0
  %vm852 = vcmp.ge.f32.partialorder %v847, 1.0
  %vm853 = vcmp.ge.f32.partialorder %v848, 1.0
  %vm854 = vcmp.ge.f32.partialorder %v849, 1.0
  %vm855 = vcmp.ge.f32.partialorder %v850, 1.0
  %v856 = vsel %vm851, 1, 0
  %v857 = vsel %vm852, 1, 0
  %v858 = vsel %vm853, 1, 0
  %v859 = vsel %vm854, 1, 0
  %v860 = vsel %vm855, 1, 0
  %v861 = vcvt.s32.f32 %v856
  %v862 = vcvt.s32.f32 %v857
  %v863 = vcvt.s32.f32 %v858
  %v864 = vcvt.s32.f32 %v859
  %v865 = vcvt.s32.f32 %v860
  %v866 = vadd.f32 %v18, %v861
  %v867 = vadd.f32 %v19, %v862
  %v868 = vadd.f32 %v20, %v863
  %v869 = vadd.f32 %v21, %v864
  %v870 = vadd.f32 %v22, %v865
  %871 = vst.msk [vmem:[%s4] sm:$0xff] %vm160, %v866
  %872 = vst.msk [vmem:[%s4 + $0x8] sm:$0xff] %vm160, %v867
  %873 = vst.msk [vmem:[%s4 + $0x10] sm:$0xff] %vm160, %v868
  %874 = vst.msk [vmem:[%s4 + $0x18] sm:$0xff] %vm160, %v869
  %vm875 = vcmask 519168
  %876 = vst.msk [vmem:[%s4 + $0x20] sm:$0xf] %vm875, %v870
  // Predicated region
  $region18: #{_lambda_.1} parent=0 // pred_check
    _
  $region19: #{_lambda_.1} parent=0 // pred_check_branch
    %878 = sbr.rel (0) target = $region21
  $region20: #{_lambda_.1} parent=0 // pred_region
    _
  $region21: #{_lambda_.1} parent=0 // pred_fallthru
    _
  // Predicated region
  $region22: #{_lambda_.1} parent=0 // pred_check
    _
  $region23: #{_lambda_.1} parent=0 // pred_check_branch
    %880 = sbr.rel (0) target = $region25
  $region24: #{_lambda_.1} parent=0 // pred_region
    _
  $region25: #{_lambda_.1} parent=0 // pred_fallthru
    _

</llo_original>
